<compile_context>
chip_gen: v7x
topology: tpu7x:2x2x1
jax: 0.10.0
libtpu: 0.0.40
codegen_flags: <defaults>
</compile_context>

<pallas_src>
import functools

import jax
import jax.numpy as jnp
from jax.experimental import pallas as pl
from jax.experimental.pallas import tpu as pltpu

HIDDEN = 64  # per-branch hidden width (net_arch = [dict(pi=[64,64], vf=[64,64])])


def _round_up(x, m):
    return ((x + m - 1) // m) * m


def _fused_kernel(x_ref, w1_ref, b1_ref, w2_ref, b2_ref, w3_ref, b3_ref, out_ref,
                  *, action_dim):
    # ---- fused MLP: 3 lane-dense (128-wide) matmuls on the MXU, f32 accumulate ----
    x = x_ref[...]                                                          # (TB, F) mxu dtype
    h1 = jnp.tanh(
        jnp.dot(x, w1_ref[...], preferred_element_type=jnp.float32) + b1_ref[...]
    )                                                                       # (TB, 128) f32
    h2 = jnp.tanh(
        jnp.dot(h1.astype(w2_ref.dtype), w2_ref[...],
                preferred_element_type=jnp.float32) + b2_ref[...]
    )                                                                       # (TB, 128) f32
    y = (jnp.dot(h2.astype(w3_ref.dtype), w3_ref[...],
                 preferred_element_type=jnp.float32) + b3_ref[...])         # (TB, 128) f32
    # lanes 0..A-1: action logits, lane A: value, lanes > A: 0 (pad)

    # ---- single masked pass: log-softmax + deterministic argmax + gather ----
    width = y.shape[-1]                                                     # 128 (static)
    col = jax.lax.broadcasted_iota(jnp.int32, y.shape, 1)                   # (TB, 128)
    neg = jnp.float32(-1e30)
    logits = jnp.where(col < action_dim, y, neg)                            # pad lanes -> -inf-ish

    m = jnp.max(logits, axis=-1, keepdims=True)                             # (TB, 1)
    lse = jnp.log(jnp.sum(jnp.exp(logits - m), axis=-1, keepdims=True)) + m # (TB, 1)
    log_softmax = logits - lse                                              # (TB, 128)

    # first-index tie-break argmax (matches jnp.argmax)
    action = jnp.min(jnp.where(logits >= m, col, width), axis=-1, keepdims=True)   # (TB,1) i32
    picked = jnp.sum(jnp.where(col == action, log_softmax, 0.0),
                     axis=-1, keepdims=True)                                # (TB, 1)
    value = y[:, action_dim:action_dim + 1]                                 # (TB, 1) static slice

    # ---- pack into one lane-dense slab via (1,128) one-hot constants ----
    lane = jax.lax.broadcasted_iota(jnp.int32, (1, width), 1)               # trace-time constant
    oh0 = (lane == 0).astype(jnp.float32)
    oh1 = (lane == 1).astype(jnp.float32)
    oh2 = (lane == 2).astype(jnp.float32)
    out_ref[...] = value * oh0 + picked * oh1 + action.astype(jnp.float32) * oh2


def fuse_params(params, features_dim, action_dim, hidden=HIDDEN,
                mxu_dtype=jnp.bfloat16):
    """Build the fused, lane-padded weight slabs once (outside the kernel).

    bf16 MXU operands by default (fine on v5e/v6e/v7x: MXU is bf16-native, and all
    VPU/EUP math + accumulation in the kernel stays f32). Pass jnp.float32 for exact tests.
    """
    h2 = 2 * hidden                                   # 128
    out_w = _round_up(action_dim + 1, 128)            # 128 (logits + value + pad)

    w1 = jnp.zeros((features_dim, h2), jnp.float32)   # no feature-dim padding
    w1 = w1.at[:, :hidden].set(params["w1p"])
    w1 = w1.at[:, hidden:].set(params["w1v"])
    b1 = jnp.concatenate([params["b1p"], params["b1v"]], axis=-1)          # (1, 128)

    w2 = jnp.zeros((h2, h2), jnp.float32)
    w2 = w2.at[:hidden, :hidden].set(params["w2p"])
    w2 = w2.at[hidden:, hidden:].set(params["w2v"])
    b2 = jnp.concatenate([params["b2p"], params["b2v"]], axis=-1)          # (1, 128)

    w3 = jnp.zeros((h2, out_w), jnp.float32)
    w3 = w3.at[:hidden, :action_dim].set(params["wa"])
    w3 = w3.at[hidden:, action_dim].set(params["wv"][:, 0])
    b3 = jnp.zeros((1, out_w), jnp.float32)
    b3 = b3.at[0, :action_dim].set(params["ba"][0])
    b3 = b3.at[0, action_dim].set(params["bv"][0, 0])

    return {
        "w1": w1.astype(mxu_dtype), "b1": b1,     # biases stay f32 (VPU math is f32)
        "w2": w2.astype(mxu_dtype), "b2": b2,
        "w3": w3.astype(mxu_dtype), "b3": b3,
    }


@functools.partial(jax.jit, static_argnames=("action_dim",))
def actor_critic_forward(obs, fused, action_dim):
    """obs: (B, F) float32.  Returns (actions[B] int32, values[B,1] f32, log_prob[B] f32)."""
    B, F = obs.shape
    mxu_dtype = fused["w1"].dtype
    out_w = fused["w3"].shape[1]

    # Batch tile: largest tile (cap 1024) that still leaves >=2 grid steps when B allows,
    # so dimension_semantics=("parallel",) can shard the batch across v7x's two TensorCores.
    # At tb=1024 total VMEM (obs + out double-buffered + resident weights) is ~1.5 MiB.
    tb = min(1024, _round_up(max(-(-B // 2), 1), 8))
    b_pad = _round_up(B, tb)

    obs_c = obs.astype(mxu_dtype)
    if b_pad != B:
        obs_c = jnp.pad(obs_c, ((0, b_pad - B), (0, 0)))   # batch-only zero padding

    grid = (b_pad // tb,)
    resident = lambda i: (0, 0)   # weights stay in VMEM across the whole grid

    packed = pl.pallas_call(
        functools.partial(_fused_kernel, action_dim=action_dim),
        out_shape=jax.ShapeDtypeStruct((b_pad, out_w), jnp.float32),
        grid=grid,
        in_specs=[
            pl.BlockSpec((tb, F), lambda i: (i, 0)),      # obs tile (pipelined), native F
            pl.BlockSpec((F, 128), resident),             # w1 (full-extent last-2 dims)
            pl.BlockSpec((1, 128), resident),             # b1
            pl.BlockSpec((128, 128), resident),           # w2
            pl.BlockSpec((1, 128), resident),             # b2
            pl.BlockSpec((128, out_w), resident),         # w3
            pl.BlockSpec((1, out_w), resident),           # b3
        ],
        out_specs=pl.BlockSpec((tb, out_w), lambda i: (i, 0)),  # lane-dense packed output
        compiler_params=pltpu.CompilerParams(
            dimension_semantics=("parallel",),
        ),
    )(obs_c, fused["w1"], fused["b1"], fused["w2"], fused["b2"],
      fused["w3"], fused["b3"])

    head = packed[:B, :3]                      # single slice of the packed slab (under jit)
    values = head[:, 0:1]
    log_prob = head[:, 1]
    actions = head[:, 2].astype(jnp.int32)     # exact round-trip for action_dim < 2^24
    return actions, values, log_prob


def init_params(key, features_dim, action_dim, hidden=HIDDEN):
    """Deterministic synthetic init. Weights stored (in, out); biases (1, out) = 0
    (matching ortho_init's zero bias)."""
    ks = jax.random.split(key, 6)

    def w(k, fan_in, fan_out, gain):
        return gain * jax.random.normal(k, (fan_in, fan_out), jnp.float32) / jnp.sqrt(fan_in)

    g = jnp.sqrt(2.0)  # mlp_extractor gain
    return {
        "w1p": w(ks[0], features_dim, hidden, g), "b1p": jnp.zeros((1, hidden), jnp.float32),
        "w2p": w(ks[1], hidden, hidden, g),       "b2p": jnp.zeros((1, hidden), jnp.float32),
        "w1v": w(ks[2], features_dim, hidden, g), "b1v": jnp.zeros((1, hidden), jnp.float32),
        "w2v": w(ks[3], hidden, hidden, g),       "b2v": jnp.zeros((1, hidden), jnp.float32),
        "wa":  w(ks[4], hidden, action_dim, 0.01), "ba": jnp.zeros((1, action_dim), jnp.float32),
        "wv":  w(ks[5], hidden, 1, 1.0),           "bv": jnp.zeros((1, 1), jnp.float32),
    }


def _reference_forward(obs, p, mxu_dtype=jnp.float32):
    """Plain-JAX reference (unfused). mxu_dtype casts matmul operands the same way the
    kernel does (f32 accumulation, f32 bias/tanh/softmax)."""
    c = lambda a: a.astype(mxu_dtype)
    dot = lambda a, b: jnp.dot(c(a), c(b), preferred_element_type=jnp.float32)
    h1p = jnp.tanh(dot(obs, p["w1p"]) + p["b1p"])
    h2p = jnp.tanh(dot(h1p, p["w2p"]) + p["b2p"])
    h1v = jnp.tanh(dot(obs, p["w1v"]) + p["b1v"])
    h2v = jnp.tanh(dot(h1v, p["w2v"]) + p["b2v"])
    logits = dot(h2p, p["wa"]) + p["ba"]
    values = dot(h2v, p["wv"]) + p["bv"]
    actions = jnp.argmax(logits, axis=-1)
    lsm = jax.nn.log_softmax(logits, axis=-1)
    log_prob = jnp.take_along_axis(lsm, actions[:, None], axis=-1)[:, 0]
    return actions, values, log_prob


if __name__ == "__main__":
    F, A = 24, 5  # flattened obs dim, number of discrete actions

    key = jax.random.PRNGKey(0)
    k_obs, k_obs2, k_par = jax.random.split(key, 3)
    params = init_params(k_par, F, A)

    # ---- exact-path check (f32 MXU operands), small batch / single tile ----
    obs = jax.random.normal(k_obs, (4, F), jnp.float32)
    fused_f32 = fuse_params(params, F, A, mxu_dtype=jnp.float32)
    actions, values, log_prob = actor_critic_forward(obs, fused_f32, A)
    jax.block_until_ready((actions, values, log_prob))
    ra, rv, rlp = _reference_forward(obs, params, jnp.float32)
    assert actions.shape == (4,) and values.shape == (4, 1) and log_prob.shape == (4,)
    assert jnp.all(actions == ra)
    assert jnp.allclose(values, rv, atol=1e-4)
    assert jnp.allclose(log_prob, rlp, atol=1e-4)

    # ---- multi-tile grid (>1 step) + batch-padding path, f32 ----
    obs_big = jax.random.normal(k_obs2, (40, F), jnp.float32)
    actions, values, log_prob = actor_critic_forward(obs_big, fused_f32, A)
    jax.block_until_ready((actions, values, log_prob))
    ra, rv, rlp = _reference_forward(obs_big, params, jnp.float32)
    assert jnp.all(actions == ra)
    assert jnp.allclose(values, rv, atol=1e-4)
    assert jnp.allclose(log_prob, rlp, atol=1e-4)

    # ---- default path: bf16 MXU operands, f32 accumulate / VPU math ----
    fused_bf16 = fuse_params(params, F, A)  # mxu_dtype defaults to bfloat16
    actions, values, log_prob = actor_critic_forward(obs, fused_bf16, A)
    jax.block_until_ready((actions, values, log_prob))
    ra, rv, rlp = _reference_forward(obs, params, jnp.bfloat16)
    assert jnp.all(actions == ra)
    assert jnp.allclose(values, rv, atol=5e-3)
    assert jnp.allclose(log_prob, rlp, atol=5e-3)

    print("KERNEL_OK")
</pallas_src>

<mosaic_0001>
module attributes {stable_mosaic.version = 11 : i64} {
  func.func @_fused_kernel(%arg0: i32, %arg1: memref<8x24xf32, #tpu.memory_space<vmem>>, %arg2: memref<24x128xf32, #tpu.memory_space<vmem>>, %arg3: memref<1x128xf32, #tpu.memory_space<vmem>>, %arg4: memref<128x128xf32, #tpu.memory_space<vmem>>, %arg5: memref<1x128xf32, #tpu.memory_space<vmem>>, %arg6: memref<128x128xf32, #tpu.memory_space<vmem>>, %arg7: memref<1x128xf32, #tpu.memory_space<vmem>>, %arg8: memref<8x128xf32, #tpu.memory_space<vmem>>) attributes {dimension_semantics = [#tpu.dimension_semantics<parallel>], iteration_bounds = array<i64: 1>, scalar_prefetch = 0 : i64, scratch_operands = 0 : i64, tpu.core_type = #tpu.core_type<tc>, window_params = [{transform_indices = @transform_0, window_bounds = array<i64: 8, 24>}, {pipeline_mode = #tpu.pipeline_mode<synchronous>, transform_indices = @transform_1, window_bounds = array<i64: 24, 128>}, {pipeline_mode = #tpu.pipeline_mode<synchronous>, transform_indices = @transform_2, window_bounds = array<i64: 1, 128>}, {pipeline_mode = #tpu.pipeline_mode<synchronous>, transform_indices = @transform_3, window_bounds = array<i64: 128, 128>}, {pipeline_mode = #tpu.pipeline_mode<synchronous>, transform_indices = @transform_4, window_bounds = array<i64: 1, 128>}, {pipeline_mode = #tpu.pipeline_mode<synchronous>, transform_indices = @transform_5, window_bounds = array<i64: 128, 128>}, {pipeline_mode = #tpu.pipeline_mode<synchronous>, transform_indices = @transform_6, window_bounds = array<i64: 1, 128>}, {transform_indices = @transform_7, window_bounds = array<i64: 8, 128>}]} {
    %c0 = arith.constant 0 : index
    %c0_0 = arith.constant 0 : index
    %0 = vector.load %arg1[%c0, %c0_0] : memref<8x24xf32, #tpu.memory_space<vmem>>, vector<8x24xf32>
    %c0_1 = arith.constant 0 : index
    %c0_2 = arith.constant 0 : index
    %1 = vector.load %arg2[%c0_1, %c0_2] : memref<24x128xf32, #tpu.memory_space<vmem>>, vector<24x128xf32>
    %cst = arith.constant dense<0.000000e+00> : vector<8x128xf32>
    %2 = tpu.matmul %0, %1, %cst {dimension_numbers = #tpu.dot_dimension_numbers<[1], [0], [0], [1], [0, 0, 1, 1], [], []>} : vector<8x24xf32>, vector<24x128xf32>, vector<8x128xf32> -> vector<8x128xf32>
    %c0_3 = arith.constant 0 : index
    %c0_4 = arith.constant 0 : index
    %3 = vector.load %arg3[%c0_3, %c0_4] : memref<1x128xf32, #tpu.memory_space<vmem>>, vector<1x128xf32>
    %4 = vector.broadcast %3 : vector<1x128xf32> to vector<8x128xf32>
    %5 = arith.addf %2, %4 : vector<8x128xf32>
    %6 = math.tanh %5 : vector<8x128xf32>
    %c0_5 = arith.constant 0 : index
    %c0_6 = arith.constant 0 : index
    %7 = vector.load %arg4[%c0_5, %c0_6] : memref<128x128xf32, #tpu.memory_space<vmem>>, vector<128x128xf32>
    %cst_7 = arith.constant dense<0.000000e+00> : vector<8x128xf32>
    %8 = tpu.matmul %6, %7, %cst_7 {dimension_numbers = #tpu.dot_dimension_numbers<[1], [0], [0], [1], [0, 0, 1, 1], [], []>} : vector<8x128xf32>, vector<128x128xf32>, vector<8x128xf32> -> vector<8x128xf32>
    %c0_8 = arith.constant 0 : index
    %c0_9 = arith.constant 0 : index
    %9 = vector.load %arg5[%c0_8, %c0_9] : memref<1x128xf32, #tpu.memory_space<vmem>>, vector<1x128xf32>
    %10 = vector.broadcast %9 : vector<1x128xf32> to vector<8x128xf32>
    %11 = arith.addf %8, %10 : vector<8x128xf32>
    %12 = math.tanh %11 : vector<8x128xf32>
    %c0_10 = arith.constant 0 : index
    %c0_11 = arith.constant 0 : index
    %13 = vector.load %arg6[%c0_10, %c0_11] : memref<128x128xf32, #tpu.memory_space<vmem>>, vector<128x128xf32>
    %cst_12 = arith.constant dense<0.000000e+00> : vector<8x128xf32>
    %14 = tpu.matmul %12, %13, %cst_12 {dimension_numbers = #tpu.dot_dimension_numbers<[1], [0], [0], [1], [0, 0, 1, 1], [], []>} : vector<8x128xf32>, vector<128x128xf32>, vector<8x128xf32> -> vector<8x128xf32>
    %c0_13 = arith.constant 0 : index
    %c0_14 = arith.constant 0 : index
    %15 = vector.load %arg7[%c0_13, %c0_14] : memref<1x128xf32, #tpu.memory_space<vmem>>, vector<1x128xf32>
    %16 = vector.broadcast %15 : vector<1x128xf32> to vector<8x128xf32>
    %17 = arith.addf %14, %16 : vector<8x128xf32>
    %18 = tpu.iota {dimensions = array<i32: 1>} : vector<8x128xi32>
    %c5_i32 = arith.constant 5 : i32
    %19 = vector.broadcast %c5_i32 : i32 to vector<8x128xi32>
    %20 = arith.cmpi slt, %18, %19 : vector<8x128xi32>
    %cst_15 = arith.constant -1.000000e+30 : f32
    %21 = vector.broadcast %cst_15 : f32 to vector<8x128xf32>
    %22 = arith.select %20, %17, %21 : vector<8x128xi1>, vector<8x128xf32>
    %cst_16 = arith.constant dense<0xFF800000> : vector<8xf32>
    %23 = vector.multi_reduction <maximumf>, %22, %cst_16 [1] : vector<8x128xf32> to vector<8xf32>
    %24 = vector.shape_cast %23 : vector<8xf32> to vector<8x1xf32>
    %25 = vector.broadcast %24 : vector<8x1xf32> to vector<8x128xf32>
    %26 = arith.subf %22, %25 : vector<8x128xf32>
    %27 = math.exp %26 : vector<8x128xf32>
    %cst_17 = arith.constant dense<0.000000e+00> : vector<8xf32>
    %28 = vector.multi_reduction <add>, %27, %cst_17 [1] : vector<8x128xf32> to vector<8xf32>
    %29 = vector.shape_cast %28 : vector<8xf32> to vector<8x1xf32>
    %30 = math.log %29 : vector<8x1xf32>
    %31 = arith.addf %30, %24 : vector<8x1xf32>
    %32 = vector.broadcast %31 : vector<8x1xf32> to vector<8x128xf32>
    %33 = arith.subf %22, %32 : vector<8x128xf32>
    %34 = vector.broadcast %24 : vector<8x1xf32> to vector<8x128xf32>
    %35 = arith.cmpf oge, %22, %34 : vector<8x128xf32>
    %c128_i32 = arith.constant 128 : i32
    %36 = vector.broadcast %c128_i32 : i32 to vector<8x128xi32>
    %37 = arith.select %35, %18, %36 : vector<8x128xi1>, vector<8x128xi32>
    %cst_18 = arith.constant dense<2147483647> : vector<8xi32>
    %38 = vector.multi_reduction <minsi>, %37, %cst_18 [1] : vector<8x128xi32> to vector<8xi32>
    %39 = vector.shape_cast %38 : vector<8xi32> to vector<8x1xi32>
    %40 = vector.broadcast %39 : vector<8x1xi32> to vector<8x128xi32>
    %41 = arith.cmpi eq, %18, %40 : vector<8x128xi32>
    %cst_19 = arith.constant 0.000000e+00 : f32
    %42 = vector.broadcast %cst_19 : f32 to vector<8x128xf32>
    %43 = arith.select %41, %33, %42 : vector<8x128xi1>, vector<8x128xf32>
    %cst_20 = arith.constant dense<0.000000e+00> : vector<8xf32>
    %44 = vector.multi_reduction <add>, %43, %cst_20 [1] : vector<8x128xf32> to vector<8xf32>
    %45 = vector.shape_cast %44 : vector<8xf32> to vector<8x1xf32>
    %46 = vector.extract_strided_slice %17 {offsets = [0, 5], sizes = [8, 1], strides = [1, 1]} : vector<8x128xf32> to vector<8x1xf32>
    %47 = tpu.iota {dimensions = array<i32: 1>} : vector<1x128xi32>
    %c0_i32 = arith.constant 0 : i32
    %48 = vector.broadcast %c0_i32 : i32 to vector<1x128xi32>
    %49 = arith.cmpi eq, %47, %48 : vector<1x128xi32>
    %50 = arith.extui %49 : vector<1x128xi1> to vector<1x128xi32>
    %51 = arith.sitofp %50 : vector<1x128xi32> to vector<1x128xf32>
    %c1_i32 = arith.constant 1 : i32
    %52 = vector.broadcast %c1_i32 : i32 to vector<1x128xi32>
    %53 = arith.cmpi eq, %47, %52 : vector<1x128xi32>
    %54 = arith.extui %53 : vector<1x128xi1> to vector<1x128xi32>
    %55 = arith.sitofp %54 : vector<1x128xi32> to vector<1x128xf32>
    %c2_i32 = arith.constant 2 : i32
    %56 = vector.broadcast %c2_i32 : i32 to vector<1x128xi32>
    %57 = arith.cmpi eq, %47, %56 : vector<1x128xi32>
    %58 = arith.extui %57 : vector<1x128xi1> to vector<1x128xi32>
    %59 = arith.sitofp %58 : vector<1x128xi32> to vector<1x128xf32>
    %60 = vector.broadcast %46 : vector<8x1xf32> to vector<8x128xf32>
    %61 = vector.broadcast %51 : vector<1x128xf32> to vector<8x128xf32>
    %62 = arith.mulf %60, %61 : vector<8x128xf32>
    %63 = vector.broadcast %45 : vector<8x1xf32> to vector<8x128xf32>
    %64 = vector.broadcast %55 : vector<1x128xf32> to vector<8x128xf32>
    %65 = arith.mulf %63, %64 : vector<8x128xf32>
    %66 = arith.addf %62, %65 : vector<8x128xf32>
    %67 = arith.sitofp %39 : vector<8x1xi32> to vector<8x1xf32>
    %68 = vector.broadcast %67 : vector<8x1xf32> to vector<8x128xf32>
    %69 = vector.broadcast %59 : vector<1x128xf32> to vector<8x128xf32>
    %70 = arith.mulf %68, %69 : vector<8x128xf32>
    %71 = arith.addf %66, %70 : vector<8x128xf32>
    %c0_21 = arith.constant 0 : index
    %c0_22 = arith.constant 0 : index
    %72 = vector.load %arg8[%c0_21, %c0_22] : memref<8x128xf32, #tpu.memory_space<vmem>>, vector<8x128xf32>
    tpu.vector_store %arg8[%c0_21, %c0_22], %71 {strides = array<i32>} : memref<8x128xf32, #tpu.memory_space<vmem>>, vector<8x128xf32>,
    return
  }
  func.func @transform_0(%arg0: i32) -> (i32, i32) {
    %c0_i32 = arith.constant 0 : i32
    %c0_i32_0 = arith.constant 0 : i32
    return %arg0, %c0_i32 : i32, i32
  }
  func.func @transform_1(%arg0: i32) -> (i32, i32) {
    %c0_i32 = arith.constant 0 : i32
    %c0_i32_0 = arith.constant 0 : i32
    %c0_i32_1 = arith.constant 0 : i32
    return %c0_i32, %c0_i32_0 : i32, i32
  }
  func.func @transform_2(%arg0: i32) -> (i32, i32) {
    %c0_i32 = arith.constant 0 : i32
    %c0_i32_0 = arith.constant 0 : i32
    %c0_i32_1 = arith.constant 0 : i32
    return %c0_i32, %c0_i32_0 : i32, i32
  }
  func.func @transform_3(%arg0: i32) -> (i32, i32) {
    %c0_i32 = arith.constant 0 : i32
    %c0_i32_0 = arith.constant 0 : i32
    %c0_i32_1 = arith.constant 0 : i32
    return %c0_i32, %c0_i32_0 : i32, i32
  }
  func.func @transform_4(%arg0: i32) -> (i32, i32) {
    %c0_i32 = arith.constant 0 : i32
    %c0_i32_0 = arith.constant 0 : i32
    %c0_i32_1 = arith.constant 0 : i32
    return %c0_i32, %c0_i32_0 : i32, i32
  }
  func.func @transform_5(%arg0: i32) -> (i32, i32) {
    %c0_i32 = arith.constant 0 : i32
    %c0_i32_0 = arith.constant 0 : i32
    %c0_i32_1 = arith.constant 0 : i32
    return %c0_i32, %c0_i32_0 : i32, i32
  }
  func.func @transform_6(%arg0: i32) -> (i32, i32) {
    %c0_i32 = arith.constant 0 : i32
    %c0_i32_0 = arith.constant 0 : i32
    %c0_i32_1 = arith.constant 0 : i32
    return %c0_i32, %c0_i32_0 : i32, i32
  }
  func.func @transform_7(%arg0: i32) -> (i32, i32) {
    %c0_i32 = arith.constant 0 : i32
    %c0_i32_0 = arith.constant 0 : i32
    return %arg0, %c0_i32 : i32, i32
  }
}

</mosaic_0001>

<llo_original>
// kernel: actor_critic_forward.1
$region0: #{actor_critic_forward.1}
  #allocation0 [shape = 'u32[]', space=smem, size = 0x4, offset = 0x4, fixed_abs, tag = 'smem constant byte address 0x4 - core index']
  #allocation1 [shape = 'u32[144,128]{1,0:T(1,128)}', space=vmem, size = 0x12000, scoped, tag = 'internal scratch']
  %s0 = inlined_call_operand.vmem [shape: f32[8,24], index: 0, kind: input, shape index: {}]
  %s1 = inlined_call_operand.vmem [shape: f32[24,128], index: 1, kind: input, shape index: {}]
  %s2 = inlined_call_operand.vmem [shape: f32[1,128], index: 2, kind: input, shape index: {}]
  %s3 = inlined_call_operand.hbm [shape: f32[128,128], index: 3, kind: input, shape index: {}]
  %s4 = inlined_call_operand.vmem [shape: f32[1,128], index: 4, kind: input, shape index: {}]
  %s5 = inlined_call_operand.hbm [shape: f32[128,128], index: 5, kind: input, shape index: {}]
  %s6 = inlined_call_operand.vmem [shape: f32[1,128], index: 6, kind: input, shape index: {}]
  %s7 = inlined_call_operand.vmem [shape: f32[8,128], index: 7, kind: output, shape index: {}]
  %s8 = sld [smem:[#allocation0]]
  $region46: #{actor_critic_forward.1} parent=0
    _
  %s10 = ssub.s32 1, %s8
  %s11 = scalar_select 0, %s10, %s8
  $region1: #{actor_critic_forward.1} parent=0
    #allocation2 [shape = 'u8[65536]{0}', space=vmem, size = 0x10000, scoped, tag = 'input window, operand 3, single buffered']
    #allocation3 [shape = 's32[1]{0}', space=sflag, size = 0x4, scoped, tag = 'scoped memory for actor_critic_forward.1']
    #allocation4 [shape = 'u8[65536]{0}', space=vmem, size = 0x10000, scoped, tag = 'input window, operand 5, single buffered']
    #allocation5 [shape = 's32[1]{0}', space=sflag, size = 0x4, scoped, tag = 'scoped memory for actor_critic_forward.1']
    %12 = vsyncpa [#allocation3], 0
    %13 = vsyncpa [#allocation5], 0
    // Predicated region
    $region2: #{actor_critic_forward.1} parent=1 // pred_check
      _
    $region3: #{actor_critic_forward.1} parent=1 // pred_check_branch
      %15 = sbr.rel (0) target = $region5
    $region4: #{actor_critic_forward.1} parent=1 // pred_region
      _
    $region5: #{actor_critic_forward.1} parent=1 // pred_fallthru
      _
    // Predicated region
    $region6: #{actor_critic_forward.1} parent=1 // pred_check
      _
    $region7: #{actor_critic_forward.1} parent=1 // pred_check_branch
      %17 = sbr.rel (0) target = $region9
    $region8: #{actor_critic_forward.1} parent=1 // pred_region
      _
    $region9: #{actor_critic_forward.1} parent=1 // pred_fallthru
      _
    // Predicated region
    $region10: #{actor_critic_forward.1} parent=1 // pred_check
      _
    $region11: #{actor_critic_forward.1} parent=1 // pred_check_branch
      %19 = sbr.rel (0) target = $region13
    $region12: #{actor_critic_forward.1} parent=1 // pred_region
      _
    $region13: #{actor_critic_forward.1} parent=1 // pred_fallthru
      _
    // Predicated region
    $region14: #{actor_critic_forward.1} parent=1 // pred_check
      _
    $region15: #{actor_critic_forward.1} parent=1 // pred_check_branch
      %21 = sbr.rel (0) target = $region17
    $region16: #{actor_critic_forward.1} parent=1 // pred_region
      %s23 = ssub.s32 2048, 2048
      %24 = vsyncadd [#allocation3], %s23
      %s25 = sshll.u32 [#allocation2], 4
      %s26 = int_to_ptr.vmem [resolvable:$true] %s25
      %31 = dma.hbm_to_vmem [thread:$0]  %s3, 2048, %s26, [#allocation3], 128, 128, 8
    $region17: #{actor_critic_forward.1} parent=1 // pred_fallthru
      _
    // Predicated region
    $region18: #{actor_critic_forward.1} parent=1 // pred_check
      _
    $region19: #{actor_critic_forward.1} parent=1 // pred_check_branch
      %33 = sbr.rel (0) target = $region21
    $region20: #{actor_critic_forward.1} parent=1 // pred_region
      _
    $region21: #{actor_critic_forward.1} parent=1 // pred_fallthru
      _
    // Predicated region
    $region22: #{actor_critic_forward.1} parent=1 // pred_check
      _
    $region23: #{actor_critic_forward.1} parent=1 // pred_check_branch
      %35 = sbr.rel (0) target = $region25
    $region24: #{actor_critic_forward.1} parent=1 // pred_region
      %s37 = ssub.s32 2048, 2048
      %38 = vsyncadd [#allocation5], %s37
      %s39 = sshll.u32 [#allocation4], 4
      %s40 = int_to_ptr.vmem [resolvable:$true] %s39
      %45 = dma.hbm_to_vmem [thread:$0]  %s5, 2048, %s40, [#allocation5], 128, 128, 8
    $region25: #{actor_critic_forward.1} parent=1 // pred_fallthru
      _
    // Predicated region
    $region26: #{actor_critic_forward.1} parent=1 // pred_check
      _
    $region27: #{actor_critic_forward.1} parent=1 // pred_check_branch
      %47 = sbr.rel (0) target = $region29
    $region28: #{actor_critic_forward.1} parent=1 // pred_region
      _
    $region29: #{actor_critic_forward.1} parent=1 // pred_fallthru
      _
    // Predicated region
    $region30: #{actor_critic_forward.1} parent=1 // pred_check
      _
    $region31: #{actor_critic_forward.1} parent=1 // pred_check_branch
      %49 = sbr.rel (0) target = $region33
    $region32: #{actor_critic_forward.1} parent=1 // pred_region
      %50 = dma.done [#allocation3], 2048
    $region33: #{actor_critic_forward.1} parent=1 // pred_fallthru
      _
    // Predicated region
    $region34: #{actor_critic_forward.1} parent=1 // pred_check
      _
    $region35: #{actor_critic_forward.1} parent=1 // pred_check_branch
      %52 = sbr.rel (0) target = $region37
    $region36: #{actor_critic_forward.1} parent=1 // pred_region
      %53 = dma.done [#allocation5], 2048
    $region37: #{actor_critic_forward.1} parent=1 // pred_fallthru
      _
    %v54 = vld [vmem:[%s0] sm:$0xff]
    %v55 = vld [vmem:[%s1] sm:$0xff]
    %v56 = vld [vmem:[%s1 + $0x8] sm:$0xff]
    %v57 = vld [vmem:[%s1 + $0x10] sm:$0xff]
    %v58 = vld [vmem:[%s2] sm:$0x1]
    %v60 = vlaneseq
    %v61 = vshrl.u32 %v60, 7
    %v62 = vsub.s32 0, %v61
    %v63 = vrot.slane %v58, %v62
    %vm65 = vcmask 195584
    %v67 = vsel %vm65, %v54, 0
    %69 = vmatprep.subr.mxu0 0.0
    %70 = vmatpush1.msra.mxu0 %v55
    %71 = vmatprep.subr.mxu0 0.0
    %72 = vmatpush1.msra.mxu0 %v56
    %73 = vmatprep.subr.mxu0 0.0
    %74 = vmatpush1.msra.mxu0 %v57
    %75 = vmatprep.subr.mxu0 0.0
    %76 = vmatpush1.msra.mxu0 0.0
    %77 = vmatprep.subr.mxu0 0.0
    %78 = vmatpush1.msra.mxu0 0.0
    %79 = vmatprep.subr.mxu0 0.0
    %80 = vmatpush1.msra.mxu0 0.0
    %81 = vmatprep.subr.mxu0 0.0
    %82 = vmatpush1.msra.mxu0 0.0
    %83 = vmatprep.subr.mxu0 0.0
    %84 = vmatpush1.msra.mxu0 0.0
    %85 = vmatprep.subr.mxu0 0.0
    %86 = vmatpush1.msra.mxu0 0.0
    %87 = vmatprep.subr.mxu0 0.0
    %88 = vmatpush1.msra.mxu0 0.0
    %89 = vmatprep.subr.mxu0 0.0
    %90 = vmatpush1.msra.mxu0 0.0
    %91 = vmatprep.subr.mxu0 0.0
    %92 = vmatpush1.msra.mxu0 0.0
    %93 = vmatprep.subr.mxu0 0.0
    %94 = vmatpush1.msra.mxu0 0.0
    %95 = vmatprep.subr.mxu0 0.0
    %96 = vmatpush1.msra.mxu0 0.0
    %97 = vmatprep.subr.mxu0 0.0
    %98 = vmatpush1.msra.mxu0 0.0
    %99 = vmatprep.subr.mxu0 0.0
    %100 = vmatpush1.msra.mxu0 0.0
    %101 = vmatprep.subr.mxu0 0.0
    %102 = vmatpush1.msra.mxu0 0.0
    %103 = vmatprep.subr.mxu0 0.0
    %104 = vmatpush1.msra.mxu0 0.0
    %105 = vmatprep.subr.mxu0 0.0
    %106 = vmatpush1.msra.mxu0 0.0
    %107 = vmatprep.subr.mxu0 0.0
    %108 = vmatpush1.msra.mxu0 0.0
    %109 = vmatprep.subr.mxu0 0.0
    %110 = vmatpush1.msra.mxu0 0.0
    %111 = vmatprep.subr.mxu0 0.0
    %112 = vmatpush1.msra.mxu0 0.0
    %113 = vmatprep.subr.mxu0 0.0
    %114 = vmatpush1.msra.mxu0 0.0
    %115 = vmatprep.subr.mxu0 0.0
    %116 = vmatpush1.msra.mxu0 0.0
    %117 = vmatprep.subr.mxu0 0.0
    %118 = vmatpush1.msra.mxu0 0.0
    %119 = vmatprep.subr.mxu0 0.0
    %120 = vmatpush1.msra.mxu0 0.0
    %121 = vmatprep.subr.mxu0 0.0
    %122 = vmatpush1.msra.mxu0 0.0
    %123 = vmatprep.subr.mxu0 0.0
    %124 = vmatpush1.msra.mxu0 0.0
    %125 = vmatprep.subr.mxu0 0.0
    %126 = vmatpush1.msra.mxu0 0.0
    %127 = vmatprep.subr.mxu0 0.0
    %128 = vmatpush1.msra.mxu0 0.0
    %129 = vmatprep.subr.mxu0 0.0
    %130 = vmatpush1.msra.mxu0 0.0
    %131 = vmatprep.subr.mxu0 0.0
    %132 = vmatpush1.msra.mxu0 0.0
    %133 = vmatprep.mubr.f32.mxu0 0.0
    %134 = vmatmul.mubr.f32.gmra.mrb[0].mxu0 %v67
    %v135 = vpop.f32.mrb[0].mxu0
    %v136 = vadd.f32 %v63, %v135
    %v137 = vpop.f32.mrb[0].mxu0
    %138 = vdwg.mxu0
    %v139 = vtanh.pop %v136
    %v140 = vld [vmem:[#allocation2] sm:$0xff]
    %v141 = vld [vmem:[#allocation2 + $0x8] sm:$0xff]
    %v142 = vld [vmem:[#allocation2 + $0x10] sm:$0xff]
    %v143 = vld [vmem:[#allocation2 + $0x18] sm:$0xff]
    %v144 = vld [vmem:[#allocation2 + $0x20] sm:$0xff]
    %v145 = vld [vmem:[#allocation2 + $0x28] sm:$0xff]
    %v146 = vld [vmem:[#allocation2 + $0x30] sm:$0xff]
    %v147 = vld [vmem:[#allocation2 + $0x38] sm:$0xff]
    %v148 = vld [vmem:[#allocation2 + $0x40] sm:$0xff]
    %v149 = vld [vmem:[#allocation2 + $0x48] sm:$0xff]
    %v150 = vld [vmem:[#allocation2 + $0x50] sm:$0xff]
    %v151 = vld [vmem:[#allocation2 + $0x58] sm:$0xff]
    %v152 = vld [vmem:[#allocation2 + $0x60] sm:$0xff]
    %v153 = vld [vmem:[#allocation2 + $0x68] sm:$0xff]
    %v154 = vld [vmem:[#allocation2 + $0x70] sm:$0xff]
    %v155 = vld [vmem:[#allocation2 + $0x78] sm:$0xff]
    %v156 = vld [vmem:[%s4] sm:$0x1]
    %v158 = vlaneseq
    %v159 = vshrl.u32 %v158, 7
    %v160 = vsub.s32 0, %v159
    %v161 = vrot.slane %v156, %v160
    %163 = vmatprep.subr.mxu0 0.0
    %164 = vmatpush1.msra.mxu0 %v140
    %165 = vmatprep.subr.mxu0 0.0
    %166 = vmatpush1.msra.mxu0 %v141
    %167 = vmatprep.subr.mxu0 0.0
    %168 = vmatpush1.msra.mxu0 %v142
    %169 = vmatprep.subr.mxu0 0.0
    %170 = vmatpush1.msra.mxu0 %v143
    %171 = vmatprep.subr.mxu0 0.0
    %172 = vmatpush1.msra.mxu0 %v144
    %173 = vmatprep.subr.mxu0 0.0
    %174 = vmatpush1.msra.mxu0 %v145
    %175 = vmatprep.subr.mxu0 0.0
    %176 = vmatpush1.msra.mxu0 %v146
    %177 = vmatprep.subr.mxu0 0.0
    %178 = vmatpush1.msra.mxu0 %v147
    %179 = vmatprep.subr.mxu0 0.0
    %180 = vmatpush1.msra.mxu0 %v148
    %181 = vmatprep.subr.mxu0 0.0
    %182 = vmatpush1.msra.mxu0 %v149
    %183 = vmatprep.subr.mxu0 0.0
    %184 = vmatpush1.msra.mxu0 %v150
    %185 = vmatprep.subr.mxu0 0.0
    %186 = vmatpush1.msra.mxu0 %v151
    %187 = vmatprep.subr.mxu0 0.0
    %188 = vmatpush1.msra.mxu0 %v152
    %189 = vmatprep.subr.mxu0 0.0
    %190 = vmatpush1.msra.mxu0 %v153
    %191 = vmatprep.subr.mxu0 0.0
    %192 = vmatpush1.msra.mxu0 %v154
    %193 = vmatprep.subr.mxu0 0.0
    %194 = vmatpush1.msra.mxu0 %v155
    %195 = vmatprep.subr.mxu0 0.0
    %196 = vmatpush1.msra.mxu0 0.0
    %197 = vmatprep.subr.mxu0 0.0
    %198 = vmatpush1.msra.mxu0 0.0
    %199 = vmatprep.subr.mxu0 0.0
    %200 = vmatpush1.msra.mxu0 0.0
    %201 = vmatprep.subr.mxu0 0.0
    %202 = vmatpush1.msra.mxu0 0.0
    %203 = vmatprep.subr.mxu0 0.0
    %204 = vmatpush1.msra.mxu0 0.0
    %205 = vmatprep.subr.mxu0 0.0
    %206 = vmatpush1.msra.mxu0 0.0
    %207 = vmatprep.subr.mxu0 0.0
    %208 = vmatpush1.msra.mxu0 0.0
    %209 = vmatprep.subr.mxu0 0.0
    %210 = vmatpush1.msra.mxu0 0.0
    %211 = vmatprep.subr.mxu0 0.0
    %212 = vmatpush1.msra.mxu0 0.0
    %213 = vmatprep.subr.mxu0 0.0
    %214 = vmatpush1.msra.mxu0 0.0
    %215 = vmatprep.subr.mxu0 0.0
    %216 = vmatpush1.msra.mxu0 0.0
    %217 = vmatprep.subr.mxu0 0.0
    %218 = vmatpush1.msra.mxu0 0.0
    %219 = vmatprep.subr.mxu0 0.0
    %220 = vmatpush1.msra.mxu0 0.0
    %221 = vmatprep.subr.mxu0 0.0
    %222 = vmatpush1.msra.mxu0 0.0
    %223 = vmatprep.subr.mxu0 0.0
    %224 = vmatpush1.msra.mxu0 0.0
    %225 = vmatprep.subr.mxu0 0.0
    %226 = vmatpush1.msra.mxu0 0.0
    %227 = vmatprep.mubr.f32.mxu0 0.0
    %228 = vmatmul.mubr.f32.gmra.mrb[0].mxu0 %v139
    %v229 = vpop.f32.mrb[0].mxu0
    %v230 = vadd.f32 %v161, %v229
    %v231 = vpop.f32.mrb[0].mxu0
    %232 = vdwg.mxu0
    %v233 = vtanh.pop %v230
    %v234 = vld [vmem:[#allocation4] sm:$0xff]
    %v235 = vld [vmem:[#allocation4 + $0x8] sm:$0xff]
    %v236 = vld [vmem:[#allocation4 + $0x10] sm:$0xff]
    %v237 = vld [vmem:[#allocation4 + $0x18] sm:$0xff]
    %v238 = vld [vmem:[#allocation4 + $0x20] sm:$0xff]
    %v239 = vld [vmem:[#allocation4 + $0x28] sm:$0xff]
    %v240 = vld [vmem:[#allocation4 + $0x30] sm:$0xff]
    %v241 = vld [vmem:[#allocation4 + $0x38] sm:$0xff]
    %v242 = vld [vmem:[#allocation4 + $0x40] sm:$0xff]
    %v243 = vld [vmem:[#allocation4 + $0x48] sm:$0xff]
    %v244 = vld [vmem:[#allocation4 + $0x50] sm:$0xff]
    %v245 = vld [vmem:[#allocation4 + $0x58] sm:$0xff]
    %v246 = vld [vmem:[#allocation4 + $0x60] sm:$0xff]
    %v247 = vld [vmem:[#allocation4 + $0x68] sm:$0xff]
    %v248 = vld [vmem:[#allocation4 + $0x70] sm:$0xff]
    %v249 = vld [vmem:[#allocation4 + $0x78] sm:$0xff]
    %v250 = vld [vmem:[%s6] sm:$0x1]
    %v252 = vlaneseq
    %v253 = vshrl.u32 %v252, 7
    %v254 = vsub.s32 0, %v253
    %v255 = vrot.slane %v250, %v254
    %257 = vmatprep.subr.mxu0 0.0
    %258 = vmatpush1.msra.mxu0 %v234
    %259 = vmatprep.subr.mxu0 0.0
    %260 = vmatpush1.msra.mxu0 %v235
    %261 = vmatprep.subr.mxu0 0.0
    %262 = vmatpush1.msra.mxu0 %v236
    %263 = vmatprep.subr.mxu0 0.0
    %264 = vmatpush1.msra.mxu0 %v237
    %265 = vmatprep.subr.mxu0 0.0
    %266 = vmatpush1.msra.mxu0 %v238
    %267 = vmatprep.subr.mxu0 0.0
    %268 = vmatpush1.msra.mxu0 %v239
    %269 = vmatprep.subr.mxu0 0.0
    %270 = vmatpush1.msra.mxu0 %v240
    %271 = vmatprep.subr.mxu0 0.0
    %272 = vmatpush1.msra.mxu0 %v241
    %273 = vmatprep.subr.mxu0 0.0
    %274 = vmatpush1.msra.mxu0 %v242
    %275 = vmatprep.subr.mxu0 0.0
    %276 = vmatpush1.msra.mxu0 %v243
    %277 = vmatprep.subr.mxu0 0.0
    %278 = vmatpush1.msra.mxu0 %v244
    %279 = vmatprep.subr.mxu0 0.0
    %280 = vmatpush1.msra.mxu0 %v245
    %281 = vmatprep.subr.mxu0 0.0
    %282 = vmatpush1.msra.mxu0 %v246
    %283 = vmatprep.subr.mxu0 0.0
    %284 = vmatpush1.msra.mxu0 %v247
    %285 = vmatprep.subr.mxu0 0.0
    %286 = vmatpush1.msra.mxu0 %v248
    %287 = vmatprep.subr.mxu0 0.0
    %288 = vmatpush1.msra.mxu0 %v249
    %289 = vmatprep.subr.mxu0 0.0
    %290 = vmatpush1.msra.mxu0 0.0
    %291 = vmatprep.subr.mxu0 0.0
    %292 = vmatpush1.msra.mxu0 0.0
    %293 = vmatprep.subr.mxu0 0.0
    %294 = vmatpush1.msra.mxu0 0.0
    %295 = vmatprep.subr.mxu0 0.0
    %296 = vmatpush1.msra.mxu0 0.0
    %297 = vmatprep.subr.mxu0 0.0
    %298 = vmatpush1.msra.mxu0 0.0
    %299 = vmatprep.subr.mxu0 0.0
    %300 = vmatpush1.msra.mxu0 0.0
    %301 = vmatprep.subr.mxu0 0.0
    %302 = vmatpush1.msra.mxu0 0.0
    %303 = vmatprep.subr.mxu0 0.0
    %304 = vmatpush1.msra.mxu0 0.0
    %305 = vmatprep.subr.mxu0 0.0
    %306 = vmatpush1.msra.mxu0 0.0
    %307 = vmatprep.subr.mxu0 0.0
    %308 = vmatpush1.msra.mxu0 0.0
    %309 = vmatprep.subr.mxu0 0.0
    %310 = vmatpush1.msra.mxu0 0.0
    %311 = vmatprep.subr.mxu0 0.0
    %312 = vmatpush1.msra.mxu0 0.0
    %313 = vmatprep.subr.mxu0 0.0
    %314 = vmatpush1.msra.mxu0 0.0
    %315 = vmatprep.subr.mxu0 0.0
    %316 = vmatpush1.msra.mxu0 0.0
    %317 = vmatprep.subr.mxu0 0.0
    %318 = vmatpush1.msra.mxu0 0.0
    %319 = vmatprep.subr.mxu0 0.0
    %320 = vmatpush1.msra.mxu0 0.0
    %321 = vmatprep.mubr.f32.mxu0 0.0
    %322 = vmatmul.mubr.f32.gmra.mrb[0].mxu0 %v233
    %v323 = vpop.f32.mrb[0].mxu0
    %v324 = vadd.f32 %v255, %v323
    %v325 = vpop.f32.mrb[0].mxu0
    %326 = vdwg.mxu0
    %v327 = vlaneseq
    %v328 = vand.u32 %v327, 127
    %vm329 = vcmp.lt.s32.totalorder %v328, 5
    %v330 = vsel %vm329, %v324, -1e+30
    %331 = vmax.xlane.f32.xlu0 %v330
    %v332 = vpop.xlane.xlu0 %331
    %v333 = vsub.f32 %v330, %v332
    %v334 = vmul.f32 %v333, 1.442695
    %v335 = vpow.pop %v334
    %336 = vadd.xlane.f32.xlu0 %v335
    %v337 = vpop.xlane.xlu0 %336
    %v338 = vlog2.pop %v337
    %v339 = vmul.f32 %v338, 0.6931472
    %v340 = vadd.f32 %v339, %v332
    %v341 = vsub.f32 %v330, %v340
    %vm342 = vcmp.ge.f32.partialorder %v330, %v332
    %v343 = vsel %vm342, %v328, 128
    %v344 = vand.u32 %v343, 65535
    %v345 = vshra.s32 %v343, 16
    %v346 = vcvt.s32.f32 %v344
    %v347 = vcvt.s32.f32 %v345
    %348 = vmin.xlane.f32.xlu0 %v347
    %v349 = vpop.xlane.xlu0 %348
    %vm350 = vcmp.eq.f32.partialorder %v347, %v349
    %v351 = vsel %vm350, %v346, inf
    %352 = vmin.xlane.f32.xlu0 %v351
    %v353 = vpop.xlane.xlu0 %352
    %v354 = vcvt.f32.s32 %v353
    %v355 = vcvt.f32.s32 %v349
    %v356 = vshll.u32 %v355, 16
    %v357 = vadd.s32 %v356, %v354
    %vm358 = vcmp.eq.s32.totalorder %v328, %v357
    %v359 = vsel %vm358, %v341, 0.0
    %360 = vadd.xlane.f32.xlu0 %v359
    %v361 = vpop.xlane.xlu0 %360
    %vm362 = vcmp.eq.s32.totalorder %v328, 0
    %v363 = vsel %vm362, 1, 0
    %v364 = vcvt.s32.f32 %v363
    %vm365 = vcmp.eq.s32.totalorder %v328, 1
    %v366 = vsel %vm365, 1, 0
    %v367 = vcvt.s32.f32 %v366
    %vm368 = vcmp.eq.s32.totalorder %v328, 2
    %v369 = vsel %vm368, 1, 0
    %v370 = vcvt.s32.f32 %v369
    %372 = vset.pattern.permute.xlu0 5
    %373 = vperm.xlu0 %372, %v324
    %v374 = vpop.permute.xlu0 %373
    %v376 = vmul.f32 %v374, %v364
    %v377 = vmul.f32 %v361, %v367
    %v378 = vadd.f32 %v376, %v377
    %v379 = vcvt.s32.f32 %v357
    %v380 = vmul.f32 %v379, %v370
    %v381 = vadd.f32 %v378, %v380
    %382 = vst [vmem:[%s7] sm:$0xff] %v381
    // Predicated region
    $region38: #{actor_critic_forward.1} parent=1 // pred_check
      _
    $region39: #{actor_critic_forward.1} parent=1 // pred_check_branch
      %384 = sbr.rel (0) target = $region41
    $region40: #{actor_critic_forward.1} parent=1 // pred_region
      _
    $region41: #{actor_critic_forward.1} parent=1 // pred_fallthru
      _
    // Predicated region
    $region42: #{actor_critic_forward.1} parent=1 // pred_check
      _
    $region43: #{actor_critic_forward.1} parent=1 // pred_check_branch
      %386 = sbr.rel (0) target = $region45
    $region44: #{actor_critic_forward.1} parent=1 // pred_region
      _
    $region45: #{actor_critic_forward.1} parent=1 // pred_fallthru
      _
    %387 = vsyncpa [#allocation3], 1
    %388 = vsyncpa [#allocation5], 1

</llo_original>
